<compile_context>
chip_gen: v5e
topology: v5e:2x2
jax: 0.10.0
libtpu: 0.0.40
codegen_flags: <defaults>
</compile_context>

<pallas_src>
import math
import numpy as np
import jax
import jax.numpy as jnp
from jax.experimental import pallas as pl
from jax.experimental.pallas import tpu as pltpu


# ---------------------------------------------------------------------------
# Kernel 1: fused sparsity measure
#   S_h = Q_h @ K_h^T (kept in VMEM/vregs only)
#   M[h, q] = max over sampled cols of S_h[q, :]  -  (sum over samples) / L_K
# The random sampling (torch.randint, with replacement) is encoded in cnt[q, k] =
# number of times column k was sampled for query q  (same matrix for all b, h).
# ---------------------------------------------------------------------------
def _make_measure_kernel(L_K):
    inv_LK = 1.0 / float(L_K)

    def kernel(q_ref, k_ref, cnt_ref, m_ref):
        # q_ref: (H, L_Q, D) bf16   k_ref: (H, L_K, D) bf16
        # cnt_ref: (L_Q, L_K) f32   m_ref: (H, L_Q) f32
        s = jax.lax.dot_general(
            q_ref[...], k_ref[...],
            dimension_numbers=(((2,), (2,)), ((0,), (0,))),
            preferred_element_type=jnp.float32)                 # (H, L_Q, L_K)
        cnt = cnt_ref[...]                                      # (L_Q, L_K)
        sampled_max = jnp.max(jnp.where(cnt > 0.0, s, -jnp.inf), axis=-1)  # (H, L_Q)
        sampled_sum = jnp.sum(s * cnt, axis=-1)                             # (H, L_Q)
        m_ref[...] = sampled_max - sampled_sum * inv_LK

    return kernel


def sparsity_measure(q_bhld, k_bhld, cnt):
    B, H, L_Q, D = q_bhld.shape
    L_K = k_bhld.shape[2]
    return pl.pallas_call(
        _make_measure_kernel(L_K),
        out_shape=jax.ShapeDtypeStruct((B, H, L_Q), jnp.float32),
        grid_spec=pltpu.PrefetchScalarGridSpec(
            num_scalar_prefetch=0,
            grid=(B,),
            in_specs=[
                pl.BlockSpec((None, H, L_Q, D), lambda b: (b, 0, 0, 0)),
                pl.BlockSpec((None, H, L_K, D), lambda b: (b, 0, 0, 0)),
                pl.BlockSpec((L_Q, L_K), lambda b: (0, 0)),     # resident constant
            ],
            out_specs=pl.BlockSpec((None, H, L_Q), lambda b: (b, 0, 0)),
        ),
        compiler_params=pltpu.CompilerParams(
            dimension_semantics=("parallel",)),
    )(q_bhld, k_bhld, cnt)


# ---------------------------------------------------------------------------
# Kernel 2: fused sparse-attention update (all H heads per grid step)
#   scores   = scale * Q_reduce @ K^T                    (H, u, L_K)
#   ProbMask = col > index[t]  (mask_flag), fill -inf
#   attn     = softmax(scores)
#   upd      = attn @ V                                  (H, u, D)   (f32)
#   ctx0     = cumsum(V)  via resident tril @ V  (mask_flag)
#              or broadcast mean(V)                      (H, L_Q, D)
#   ctx      = ctx0 with rows ctx0[index[t]] overwritten by upd[t]
#   output packed head->lane: (L_Q, H*D), full-width (128-lane) stores.
# Indices are passed in both (u,1) and (1,u) orientations (tiny) so that every
# MXU contraction stays in the standard minormost-dim form.
# ---------------------------------------------------------------------------
def _make_sparse_update_kernel(H, u, L_Q, L_K, D, scale, mask_flag):
    HD = H * D

    def kernel(idxc_ref, idxr_ref, qr_ref, k_ref, v_ref, tril_ref, place_ref, o_ref):
        idx_c = idxc_ref[...]                    # (H, u, 1) int32
        idx_r = idxr_ref[...]                    # (H, 1, u) int32
        q = qr_ref[...]                          # (H, u, D)   compute dtype
        k = k_ref[...]                           # (H, L_K, D)
        v = v_ref[...]                           # (H, L_K, D)

        scores = jax.lax.dot_general(
            q, k, dimension_numbers=(((2,), (2,)), ((0,), (0,))),
            preferred_element_type=jnp.float32) * scale          # (H, u, L_K)

        if mask_flag:
            col = jax.lax.broadcasted_iota(jnp.int32, (H, u, L_K), 2)
            scores = jnp.where(col > idx_c, -jnp.inf, scores)

        m = jnp.max(scores, axis=-1, keepdims=True)
        p = jnp.exp(scores - m)
        denom = jnp.sum(p, axis=-1, keepdims=True)
        attn = p * pl.reciprocal(denom, approx=True)             # (H, u, L_K) f32

        vf = v.astype(jnp.float32)
        upd = jax.lax.dot_general(                               # (H, u, D) f32
            attn, vf, dimension_numbers=(((2,), (1,)), ((0,), (0,))),
            preferred_element_type=jnp.float32)

        if mask_flag:
            # initial context = cumsum(V) along L, as tril @ V on the MXU
            # (tril is a resident constant; requires L_Q == L_V, asserted in wrapper)
            trilb = jnp.broadcast_to(tril_ref[...][None], (H, L_Q, L_K))
            ctx0 = jax.lax.dot_general(                          # (H, L_Q, D) f32
                trilb, v, dimension_numbers=(((2,), (1,)), ((0,), (0,))),
                preferred_element_type=jnp.float32)
        else:
            vmean = jnp.sum(vf, axis=1, keepdims=True) * (1.0 / L_K)   # (H, 1, D)
            ctx0 = jnp.broadcast_to(vmean, (H, L_Q, D))

        # Vectorized scatter.  matchT[h, l, t] = 1 iff index[h, t] == l.
        # top-k indices are distinct, so one-hot columns never collide.
        row = jax.lax.broadcasted_iota(jnp.int32, (H, L_Q, u), 1)
        matchT = (row == idx_r).astype(jnp.float32)              # (H, L_Q, u)
        scat = jax.lax.dot_general(                              # (H, L_Q, D)
            matchT, upd, dimension_numbers=(((2,), (1,)), ((0,), (0,))),
            preferred_element_type=jnp.float32)
        sel = jax.lax.dot_general(                               # (H, L_Q, D), 0/1
            matchT, jnp.ones((H, u, D), jnp.float32),
            dimension_numbers=(((2,), (1,)), ((0,), (0,))),
            preferred_element_type=jnp.float32)
        ctx = ctx0 * (1.0 - sel) + scat                          # (H, L_Q, D)

        # pack heads onto the lane axis: out[:, h*D:(h+1)*D] = ctx[h]
        # done with tiny identity-placement matmuls (exact copies, lane-dense store)
        place = place_ref[...]                                   # (H, D, H*D) f32
        out = jnp.zeros((L_Q, HD), jnp.float32)
        for h in range(H):                                       # static unroll
            out = out + jnp.dot(ctx[h], place[h],
                                preferred_element_type=jnp.float32)
        o_ref[...] = out.astype(o_ref.dtype)

    return kernel


def sparse_attention_update(index, q_reduce, k, v, tril, place, L_Q, scale,
                            mask_flag, out_dtype):
    B, H, u, D = q_reduce.shape
    L_K = k.shape[2]
    HD = H * D
    idx_c = index[..., None].astype(jnp.int32)                   # (B, H, u, 1)
    idx_r = index[:, :, None, :].astype(jnp.int32)               # (B, H, 1, u)
    kernel = _make_sparse_update_kernel(H, u, L_Q, L_K, D, scale, mask_flag)
    return pl.pallas_call(
        kernel,
        out_shape=jax.ShapeDtypeStruct((B, L_Q, HD), out_dtype),
        grid_spec=pltpu.PrefetchScalarGridSpec(
            num_scalar_prefetch=0,
            grid=(B,),
            in_specs=[
                pl.BlockSpec((None, H, u, 1), lambda b: (b, 0, 0, 0)),
                pl.BlockSpec((None, H, 1, u), lambda b: (b, 0, 0, 0)),
                pl.BlockSpec((None, H, u, D), lambda b: (b, 0, 0, 0)),
                pl.BlockSpec((None, H, L_K, D), lambda b: (b, 0, 0, 0)),
                pl.BlockSpec((None, H, L_K, D), lambda b: (b, 0, 0, 0)),
                pl.BlockSpec((L_Q, L_K), lambda b: (0, 0)),       # resident tril
                pl.BlockSpec((H, D, HD), lambda b: (0, 0, 0)),    # resident placement
            ],
            out_specs=pl.BlockSpec((None, L_Q, HD), lambda b: (b, 0, 0)),
        ),
        compiler_params=pltpu.CompilerParams(
            dimension_semantics=("parallel",)),
    )(idx_c, idx_r, q_reduce, k, v, tril, place)


# ---------------------------------------------------------------------------
# Module wrapper (mirrors ProbAttention.forward)
# ---------------------------------------------------------------------------
class ProbAttentionPallas:
    def __init__(self, mask_flag=True, factor=5, scale=None,
                 attention_dropout=0.1, output_attention=False,
                 compute_dtype=jnp.bfloat16):
        self.factor = factor
        self.scale = scale
        self.mask_flag = mask_flag
        self.output_attention = output_attention
        self.compute_dtype = compute_dtype
        # NOTE: the PyTorch module defines nn.Dropout but never applies it in forward().

    def __call__(self, queries, keys, values, attn_mask, *, sample_key):
        B, L_Q, H, D = queries.shape
        _, L_K, _, _ = keys.shape
        out_dtype = values.dtype
        cdt = self.compute_dtype

        # head-major layout for per-head MXU contractions (same transposes as PyTorch);
        # MXU operands in compute_dtype (bf16), accumulation in f32.
        q = jnp.transpose(queries, (0, 2, 1, 3)).astype(cdt)     # (B, H, L_Q, D)
        k = jnp.transpose(keys, (0, 2, 1, 3)).astype(cdt)        # (B, H, L_K, D)
        v = jnp.transpose(values, (0, 2, 1, 3)).astype(cdt)      # (B, H, L_K, D)

        U_part = min(int(self.factor * np.ceil(np.log(L_K))), L_K)   # sample_k
        u_top = min(int(self.factor * np.ceil(np.log(L_Q))), L_Q)    # n_top

        # ---- _prob_QK: fused measure kernel, only M hits HBM ----
        index_sample = jax.random.randint(sample_key, (L_Q, U_part), 0, L_K)
        cnt = jnp.zeros((L_Q, L_K), jnp.float32).at[
            jnp.arange(L_Q)[:, None], index_sample].add(1.0)
        M = sparsity_measure(q, k, cnt)                               # (B, H, L_Q)
        _, M_top = jax.lax.top_k(M, u_top)                            # (B, H, u)
        M_top = M_top.astype(jnp.int32)
        q_reduce = jnp.take_along_axis(q, M_top[..., None], axis=2)   # (B, H, u, D)

        scale = self.scale if self.scale is not None else 1.0 / math.sqrt(D)

        if self.mask_flag:
            assert L_Q == L_K, "mask_flag=True requires L_Q == L_V (cumsum initial context)"
            tril = jnp.tril(jnp.ones((L_Q, L_K), cdt))
        else:
            tril = jnp.zeros((L_Q, L_K), cdt)     # unused in kernel, keeps signature fixed

        # head -> lane placement tensor: place[h, d, h*D + d] = 1
        place_np = np.zeros((H, D, H * D), np.float32)
        for h in range(H):
            place_np[h, :, h * D:(h + 1) * D] = np.eye(D, dtype=np.float32)
        place = jnp.asarray(place_np)

        # ---- _get_initial_context + _update_context (fused), lane-dense output ----
        ctx = sparse_attention_update(M_top, q_reduce, k, v, tril, place,
                                      L_Q, scale, self.mask_flag, out_dtype)
        context = ctx.reshape(B, L_Q, H, D)                           # free reshape

        attn = None
        # TODO(synk): output_attention=True path (dense L_V x L_V attention map) not implemented.
        return context, attn


# ---------------------------------------------------------------------------
# Pure-JAX reference mirroring the PyTorch semantics (operands rounded through
# the same compute dtype so the sparsity-measure / top-k selection is identical).
# ---------------------------------------------------------------------------
def reference_forward(queries, keys, values, sample_key, mask_flag, factor,
                      scale_opt, compute_dtype=jnp.bfloat16):
    B, L_Q, H, D = queries.shape
    L_K = keys.shape[1]
    f32 = jnp.float32
    hp = jax.lax.Precision.HIGHEST
    q = jnp.transpose(queries, (0, 2, 1, 3)).astype(compute_dtype).astype(f32)
    k = jnp.transpose(keys, (0, 2, 1, 3)).astype(compute_dtype).astype(f32)
    v = jnp.transpose(values, (0, 2, 1, 3)).astype(compute_dtype).astype(f32)
    U_part = min(int(factor * np.ceil(np.log(L_K))), L_K)
    u_top = min(int(factor * np.ceil(np.log(L_Q))), L_Q)

    S = jnp.einsum('bhqd,bhkd->bhqk', q, k, precision=hp)
    index_sample = jax.random.randint(sample_key, (L_Q, U_part), 0, L_K)
    qk_sample = jnp.take_along_axis(S, index_sample[None, None], axis=-1)
    M = qk_sample.max(-1) - qk_sample.sum(-1) / L_K
    _, M_top = jax.lax.top_k(M, u_top)
    q_red = jnp.take_along_axis(q, M_top[..., None], axis=2)
    scale = scale_opt if scale_opt is not None else 1.0 / math.sqrt(D)
    scores = jnp.einsum('bhud,bhkd->bhuk', q_red, k, precision=hp) * scale
    if mask_flag:
        col = jnp.arange(L_K)[None, None, None, :]
        scores = jnp.where(col > M_top[..., None], -jnp.inf, scores)
        context = jnp.cumsum(v, axis=2)
    else:
        context = jnp.broadcast_to(v.mean(axis=2, keepdims=True), (B, H, L_Q, D))
    attn = jax.nn.softmax(scores, axis=-1)
    upd = jnp.einsum('bhuk,bhkd->bhud', attn, v, precision=hp)
    b_idx = jnp.arange(B)[:, None, None]
    h_idx = jnp.arange(H)[None, :, None]
    context = context.at[b_idx, h_idx, M_top].set(upd)
    return jnp.transpose(context, (0, 2, 1, 3))


if __name__ == "__main__":
    B, L, H, D = 2, 64, 4, 32
    key = jax.random.PRNGKey(0)
    kq, kk, kv, ks = jax.random.split(key, 4)
    queries = jax.random.normal(kq, (B, L, H, D), dtype=jnp.float32)
    keys = jax.random.normal(kk, (B, L, H, D), dtype=jnp.float32)
    values = jax.random.normal(kv, (B, L, H, D), dtype=jnp.float32)

    # masked (causal ProbSparse) path
    module = ProbAttentionPallas(mask_flag=True, factor=5, scale=None,
                                 attention_dropout=0.1, output_attention=False)
    context, attn = module(queries, keys, values, None, sample_key=ks)
    context = jax.block_until_ready(context)
    assert context.shape == (B, L, H, D) and attn is None
    ref = reference_forward(queries, keys, values, ks, mask_flag=True, factor=5,
                            scale_opt=None, compute_dtype=jnp.bfloat16)
    np.testing.assert_allclose(np.asarray(context, dtype=np.float32),
                               np.asarray(ref, dtype=np.float32),
                               rtol=1e-2, atol=1e-2)

    # non-masked path (mean initial context)
    module2 = ProbAttentionPallas(mask_flag=False, factor=5, scale=None)
    ctx2, _ = module2(queries, keys, values, None, sample_key=ks)
    ctx2 = jax.block_until_ready(ctx2)
    ref2 = reference_forward(queries, keys, values, ks, mask_flag=False, factor=5,
                             scale_opt=None, compute_dtype=jnp.bfloat16)
    np.testing.assert_allclose(np.asarray(ctx2, dtype=np.float32),
                               np.asarray(ref2, dtype=np.float32),
                               rtol=1e-2, atol=1e-2)

    print("KERNEL_OK")
</pallas_src>

<mosaic_0001>
module attributes {stable_mosaic.version = 11 : i64} {
  func.func @kernel(%arg0: i32, %arg1: memref<1x4x64x32xbf16, #tpu.memory_space<vmem>>, %arg2: memref<1x4x64x32xbf16, #tpu.memory_space<vmem>>, %arg3: memref<64x64xf32, #tpu.memory_space<vmem>>, %arg4: memref<1x4x64xf32, #tpu.memory_space<vmem>>) attributes {dimension_semantics = [#tpu.dimension_semantics<parallel>], iteration_bounds = array<i64: 2>, scalar_prefetch = 0 : i64, scratch_operands = 0 : i64, tpu.core_type = #tpu.core_type<tc>, window_params = [{transform_indices = @transform_0, window_bounds = array<i64: 1, 4, 64, 32>}, {transform_indices = @transform_1, window_bounds = array<i64: 1, 4, 64, 32>}, {pipeline_mode = #tpu.pipeline_mode<synchronous>, transform_indices = @transform_2, window_bounds = array<i64: 64, 64>}, {transform_indices = @transform_3, window_bounds = array<i64: 1, 4, 64>}]} {
    %c0 = arith.constant 0 : index
    %c0_0 = arith.constant 0 : index
    %c0_1 = arith.constant 0 : index
    %c0_2 = arith.constant 0 : index
    %0 = vector.load %arg1[%c0, %c0_0, %c0_1, %c0_2] : memref<1x4x64x32xbf16, #tpu.memory_space<vmem>>, vector<1x4x64x32xbf16>
    %1 = vector.shape_cast %0 : vector<1x4x64x32xbf16> to vector<4x64x32xbf16>
    %c0_3 = arith.constant 0 : index
    %c0_4 = arith.constant 0 : index
    %c0_5 = arith.constant 0 : index
    %c0_6 = arith.constant 0 : index
    %2 = vector.load %arg2[%c0_3, %c0_4, %c0_5, %c0_6] : memref<1x4x64x32xbf16, #tpu.memory_space<vmem>>, vector<1x4x64x32xbf16>
    %3 = vector.shape_cast %2 : vector<1x4x64x32xbf16> to vector<4x64x32xbf16>
    %cst = arith.constant dense<0.000000e+00> : vector<4x64x64xf32>
    %4 = tpu.matmul %1, %3, %cst {dimension_numbers = #tpu.dot_dimension_numbers<[2], [2], [1], [1], [0, 0, 0, 1, 1, 1], [0], [0]>} : vector<4x64x32xbf16>, vector<4x64x32xbf16>, vector<4x64x64xf32> -> vector<4x64x64xf32>
    %c0_7 = arith.constant 0 : index
    %c0_8 = arith.constant 0 : index
    %5 = vector.load %arg3[%c0_7, %c0_8] : memref<64x64xf32, #tpu.memory_space<vmem>>, vector<64x64xf32>
    %cst_9 = arith.constant 0.000000e+00 : f32
    %6 = vector.broadcast %cst_9 : f32 to vector<64x64xf32>
    %7 = arith.cmpf ogt, %5, %6 : vector<64x64xf32>
    %cst_10 = arith.constant 0xFF800000 : f32
    %8 = vector.shape_cast %7 : vector<64x64xi1> to vector<1x64x64xi1>
    %9 = vector.broadcast %8 : vector<1x64x64xi1> to vector<4x64x64xi1>
    %10 = vector.broadcast %cst_10 : f32 to vector<4x64x64xf32>
    %11 = arith.select %9, %4, %10 : vector<4x64x64xi1>, vector<4x64x64xf32>
    %cst_11 = arith.constant dense<0xFF800000> : vector<4x64xf32>
    %12 = vector.multi_reduction <maximumf>, %11, %cst_11 [2] : vector<4x64x64xf32> to vector<4x64xf32>
    %13 = vector.shape_cast %5 : vector<64x64xf32> to vector<1x64x64xf32>
    %14 = vector.broadcast %13 : vector<1x64x64xf32> to vector<4x64x64xf32>
    %15 = arith.mulf %4, %14 : vector<4x64x64xf32>
    %cst_12 = arith.constant dense<0.000000e+00> : vector<4x64xf32>
    %16 = vector.multi_reduction <add>, %15, %cst_12 [2] : vector<4x64x64xf32> to vector<4x64xf32>
    %cst_13 = arith.constant 1.562500e-02 : f32
    %17 = vector.broadcast %cst_13 : f32 to vector<4x64xf32>
    %18 = arith.mulf %16, %17 : vector<4x64xf32>
    %19 = arith.subf %12, %18 : vector<4x64xf32>
    %c0_14 = arith.constant 0 : index
    %c0_15 = arith.constant 0 : index
    %c0_16 = arith.constant 0 : index
    %20 = vector.load %arg4[%c0_14, %c0_15, %c0_16] : memref<1x4x64xf32, #tpu.memory_space<vmem>>, vector<1x4x64xf32>
    %21 = vector.shape_cast %20 : vector<1x4x64xf32> to vector<4x64xf32>
    %22 = vector.shape_cast %19 : vector<4x64xf32> to vector<1x4x64xf32>
    tpu.vector_store %arg4[%c0_14, %c0_15, %c0_16], %22 {strides = array<i32>} : memref<1x4x64xf32, #tpu.memory_space<vmem>>, vector<1x4x64xf32>,
    return
  }
  func.func @transform_0(%arg0: i32) -> (i32, i32, i32, i32) {
    %c0_i32 = arith.constant 0 : i32
    %c0_i32_0 = arith.constant 0 : i32
    %c0_i32_1 = arith.constant 0 : i32
    %c0_i32_2 = arith.constant 0 : i32
    return %arg0, %c0_i32, %c0_i32_0, %c0_i32_1 : i32, i32, i32, i32
  }
  func.func @transform_1(%arg0: i32) -> (i32, i32, i32, i32) {
    %c0_i32 = arith.constant 0 : i32
    %c0_i32_0 = arith.constant 0 : i32
    %c0_i32_1 = arith.constant 0 : i32
    %c0_i32_2 = arith.constant 0 : i32
    return %arg0, %c0_i32, %c0_i32_0, %c0_i32_1 : i32, i32, i32, i32
  }
  func.func @transform_2(%arg0: i32) -> (i32, i32) {
    %c0_i32 = arith.constant 0 : i32
    %c0_i32_0 = arith.constant 0 : i32
    %c0_i32_1 = arith.constant 0 : i32
    return %c0_i32, %c0_i32_0 : i32, i32
  }
  func.func @transform_3(%arg0: i32) -> (i32, i32, i32) {
    %c0_i32 = arith.constant 0 : i32
    %c0_i32_0 = arith.constant 0 : i32
    %c0_i32_1 = arith.constant 0 : i32
    return %arg0, %c0_i32, %c0_i32_0 : i32, i32, i32
  }
}

</mosaic_0001>

<llo_original>
// kernel: tpu_custom_call.1
$region0: #{tpu_custom_call.1}
  #allocation0 [shape = 'u32[]', space=smem, size = 0x4, offset = 0x4, fixed_abs, tag = 'smem constant byte address 0x4 - core index']
  #allocation1 [shape = 'u32[72,128]{1,0:T(1,128)}', space=vmem, size = 0x9000, scoped, tag = 'internal scratch']
  %s0 = inlined_call_operand.vmem [shape: bf16[2,4,64,32], index: 0, kind: input, shape index: {}]
  %s1 = inlined_call_operand.vmem [shape: bf16[2,4,64,32], index: 1, kind: input, shape index: {}]
  %s2 = inlined_call_operand.vmem [shape: f32[64,64], index: 2, kind: input, shape index: {}]
  %s3 = inlined_call_operand.hbm [shape: f32[2,4,64], index: 3, kind: output, shape index: {}]
  %s4 = sld [smem:[#allocation0]]
  $region45: #{tpu_custom_call.1} parent=0
    _
  %s6 = ssub.s32 1, %s4
  %s7 = scalar_select 0, %s6, %s4
  $region1: #{tpu_custom_call.1} parent=0
    #allocation2 [shape = 'u8[4096]{0}', space=vmem, size = 0x1000, scoped, tag = 'output window, operand 0']
    #allocation3 [shape = 's32[2]{0}', space=sflag, size = 0x8, scoped, tag = 'scoped memory for tpu_custom_call.1']
    %8 = vsyncpa [#allocation3], 0
    %s9 = scalar_lea.sflag [#allocation3], 1
    %10 = vsyncpa %s9, 0
    loop: start=0, step=1, limit=4
    $region2: #{tpu_custom_call.1} parent=1 // loop_pre_header
      _
    $region3: #{tpu_custom_call.1} parent=1 // loop_header
      %s12 = sphi 0, %s16
      %p13 = scmp.ge.s32.totalorder %s12, 4
      %s22 = sphi 0, %s24
      %s25 = sphi 0, %s22
      %s26 = sphi 0, %s25
      %s42 = sphi 0, %s26
      %s48 = sphi 0, %s50
      %s51 = sphi 0, %s48
      %s52 = sphi 0, %s51
      %s68 = sphi 0, %s52
      %s72 = sphi 0, %s72
      %s74 = sphi 0, %s72
      %s75 = sphi 0, %s74
      %s89 = sphi 0, %s75
      %s95 = sphi 0, %s97
      %s98 = sphi 0, %s95
      %s99 = sphi 0, %s98
      %s115 = sphi 0, %s99
    $region4: #{tpu_custom_call.1} parent=1 // loop_header_branch
      %15 = sbr.rel (%p13) target = $region8
    $region5: #{tpu_custom_call.1} parent=1 // loop_body
      %s17 = ssub.s32 %s12, 1
      %s18 = ssub.s32 %s12, 2
      %s19 = sadd.s32 %s12, 1
      %s20 = ssub.s32 %s12, %s19
      %p21 = scmp.eq.s32.totalorder %s20, 0
      %s23 = sadd.s32 %s22, 1
      %s24 = scalar_select %p21, %s22, %s23
      %p27 = pneg %p21
      %p28 = scmp.eq.s32.totalorder %s12, 1
      %p29 = por %p27, %p28
      %p30 = scmp.ne.s32.totalorder %s22, %s25
      %p31 = scmp.eq.s32.totalorder %s12, 0
      %p32 = por %p30, %p31
      %p33 = scmp.ne.s32.totalorder %s22, %s25
      %p34 = scmp.eq.s32.totalorder %s17, 1
      %p35 = por %p33, %p34
      %p36 = scmp.ne.s32.totalorder %s25, %s26
      %p37 = scmp.eq.s32.totalorder %s17, 0
      %p38 = por %p36, %p37
      %p39 = scmp.ne.s32.totalorder %s25, %s26
      %p40 = scmp.eq.s32.totalorder %s18, 1
      %p41 = por %p39, %p40
      %p43 = scmp.ne.s32.totalorder %s26, %s42
      %p44 = scmp.eq.s32.totalorder %s18, 0
      %p45 = por %p43, %p44
      %s46 = ssub.s32 %s12, %s19
      %p47 = scmp.eq.s32.totalorder %s46, 0
      %s49 = sadd.s32 %s48, 1
      %s50 = scalar_select %p47, %s48, %s49
      %p53 = pneg %p47
      %p54 = scmp.eq.s32.totalorder %s12, 1
      %p55 = por %p53, %p54
      %p56 = scmp.ne.s32.totalorder %s48, %s51
      %p57 = scmp.eq.s32.totalorder %s12, 0
      %p58 = por %p56, %p57
      %p59 = scmp.ne.s32.totalorder %s48, %s51
      %p60 = scmp.eq.s32.totalorder %s17, 1
      %p61 = por %p59, %p60
      %p62 = scmp.ne.s32.totalorder %s51, %s52
      %p63 = scmp.eq.s32.totalorder %s17, 0
      %p64 = por %p62, %p63
      %p65 = scmp.ne.s32.totalorder %s51, %s52
      %p66 = scmp.eq.s32.totalorder %s18, 1
      %p67 = por %p65, %p66
      %p69 = scmp.ne.s32.totalorder %s52, %s68
      %p70 = scmp.eq.s32.totalorder %s18, 0
      %p71 = por %p69, %p70
      %s73 = sadd.s32 %s72, 1
      %p76 = scmp.eq.s32.totalorder %s12, 1
      %p77 = scmp.ne.s32.totalorder %s72, %s74
      %p78 = scmp.eq.s32.totalorder %s12, 0
      %p79 = por %p77, %p78
      %p80 = scmp.ne.s32.totalorder %s72, %s74
      %p81 = scmp.eq.s32.totalorder %s17, 1
      %p82 = por %p80, %p81
      %p83 = scmp.ne.s32.totalorder %s74, %s75
      %p84 = scmp.eq.s32.totalorder %s17, 0
      %p85 = por %p83, %p84
      %p86 = scmp.ne.s32.totalorder %s74, %s75
      %p87 = scmp.eq.s32.totalorder %s18, 1
      %p88 = por %p86, %p87
      %p90 = scmp.ne.s32.totalorder %s75, %s89
      %p91 = scmp.eq.s32.totalorder %s18, 0
      %p92 = por %p90, %p91
      %s93 = ssub.s32 %s12, %s19
      %p94 = scmp.eq.s32.totalorder %s93, 0
      %s96 = sadd.s32 %s95, 1
      %s97 = scalar_select %p94, %s95, %s96
      %p100 = pneg %p94
      %p101 = scmp.eq.s32.totalorder %s12, 1
      %p102 = por %p100, %p101
      %p103 = scmp.ne.s32.totalorder %s95, %s98
      %p104 = scmp.eq.s32.totalorder %s12, 0
      %p105 = por %p103, %p104
      %p106 = scmp.ne.s32.totalorder %s95, %s98
      %p107 = scmp.eq.s32.totalorder %s17, 1
      %p108 = por %p106, %p107
      %p109 = scmp.ne.s32.totalorder %s98, %s99
      %p110 = scmp.eq.s32.totalorder %s17, 0
      %p111 = por %p109, %p110
      %p112 = scmp.ne.s32.totalorder %s98, %s99
      %p113 = scmp.eq.s32.totalorder %s18, 1
      %p114 = por %p112, %p113
      %p116 = scmp.ne.s32.totalorder %s99, %s115
      %p117 = scmp.eq.s32.totalorder %s18, 0
      %p118 = por %p116, %p117
      %p119 = scmp.le.s32.totalorder 1, %s12
      %p120 = scmp.lt.s32.totalorder %s12, 3
      %p121 = pnand %p119, %p120
      %p122 = pneg %p121
      // Predicated region
      $region9: #{tpu_custom_call.1} parent=5 // pred_check
        _
      $region10: #{tpu_custom_call.1} parent=5 // pred_check_branch
        %124 = sbr.rel (%p121) target = $region12
      $region11: #{tpu_custom_call.1} parent=5 // pred_region
        %s125 = ssub.s32 %s12, 1
        // Predicated region
        $region13: #{tpu_custom_call.1} parent=11 // pred_check
          %p126 = pneg %p85
        $region14: #{tpu_custom_call.1} parent=11 // pred_check_branch
          %128 = sbr.rel (%p126) target = $region16
        $region15: #{tpu_custom_call.1} parent=11 // pred_region
          _
        $region16: #{tpu_custom_call.1} parent=11 // pred_fallthru
          _
      $region12: #{tpu_custom_call.1} parent=5 // pred_fallthru
        _
      %p129 = scmp.lt.s32.totalorder %s12, 2
      // Predicated region
      $region17: #{tpu_custom_call.1} parent=5 // pred_check
        %p130 = pneg %p129
      $region18: #{tpu_custom_call.1} parent=5 // pred_check_branch
        %132 = sbr.rel (%p130) target = $region20
      $region19: #{tpu_custom_call.1} parent=5 // pred_region
        // Predicated region
        $region21: #{tpu_custom_call.1} parent=19 // pred_check
          %p133 = pneg %p32
        $region22: #{tpu_custom_call.1} parent=19 // pred_check_branch
          %135 = sbr.rel (%p133) target = $region24
        $region23: #{tpu_custom_call.1} parent=19 // pred_region
          %p136 = scmp.lt.s32.totalorder %s12, 1
          %s137 = scalar_select %p136, %s12, 1
          %s138 = smul.addr %s137, 32
          %s139 = smul.addr %s138, 4
          %s140 = scalar_lea.vmem %s0, %s139
        $region24: #{tpu_custom_call.1} parent=19 // pred_fallthru
          _
        // Predicated region
        $region25: #{tpu_custom_call.1} parent=19 // pred_check
          %p141 = pneg %p58
        $region26: #{tpu_custom_call.1} parent=19 // pred_check_branch
          %143 = sbr.rel (%p141) target = $region28
        $region27: #{tpu_custom_call.1} parent=19 // pred_region
          %p144 = scmp.lt.s32.totalorder %s12, 1
          %s145 = scalar_select %p144, %s12, 1
          %s146 = smul.addr %s145, 32
          %s147 = smul.addr %s146, 4
          %s148 = scalar_lea.vmem %s1, %s147
        $region28: #{tpu_custom_call.1} parent=19 // pred_fallthru
          _
      $region20: #{tpu_custom_call.1} parent=5 // pred_fallthru
        _
      %p149 = scmp.le.s32.totalorder 1, %s12
      %p150 = scmp.lt.s32.totalorder %s12, 3
      %p151 = pnand %p149, %p150
      %p152 = pneg %p151
      // Predicated region
      $region29: #{tpu_custom_call.1} parent=5 // pred_check
        _
      $region30: #{tpu_custom_call.1} parent=5 // pred_check_branch
        %154 = sbr.rel (%p151) target = $region32
      $region31: #{tpu_custom_call.1} parent=5 // pred_region
        %s155 = ssub.s32 %s12, 1
        %p156 = scmp.lt.s32.totalorder %s17, 1
        %s157 = scalar_select %p156, %s17, 1
        %s158 = smul.addr %s157, 32
        %s159 = smul.addr %s158, 4
        %s160 = scalar_lea.vmem %s0, %s159
        %p161 = pneg %p38
        %p162 = pneg %p35
        %p163 = scmp.lt.s32.totalorder %s17, 1
        %s164 = scalar_select %p163, %s17, 1
        %s165 = smul.addr %s164, 32
        %s166 = smul.addr %s165, 4
        %s167 = scalar_lea.vmem %s1, %s166
        %p168 = pneg %p64
        %p169 = pneg %p61
        %p170 = pneg %p85
        %p171 = pneg %p82
        %p172 = pneg %p111
        %p173 = pneg %p108
        %s174 = sand.u32 %s98, 1
        %s175 = scalar_lea.sflag [#allocation3], %s174
        %s176 = sand.u32 %s98, 1
        %s177 = smul.addr %s176, 4
        %s178 = scalar_lea.vmem [#allocation2], %s177
        %p179 = scmp.lt.s32.totalorder %s17, 1
        %s180 = scalar_select %p179, %s17, 1
        %s181 = smul.addr %s180, 32
        %s182 = smul.addr %s181, 4
        %s183 = scalar_lea.vmem %s0, %s182
        %p184 = scmp.lt.s32.totalorder %s17, 1
        %s185 = scalar_select %p184, %s17, 1
        %s186 = smul.addr %s185, 32
        %s187 = smul.addr %s186, 4
        %s188 = scalar_lea.vmem %s1, %s187
        %v190 = vld [vmem:[%s183] sm:$0xf]
        %v191 = vld [vmem:[%s183 + $0x4] sm:$0xf]
        %v192 = vld [vmem:[%s183 + $0x8] sm:$0xf]
        %v193 = vld [vmem:[%s183 + $0xc] sm:$0xf]
        %v194 = vld [vmem:[%s183 + $0x10] sm:$0xf]
        %v195 = vld [vmem:[%s183 + $0x14] sm:$0xf]
        %v196 = vld [vmem:[%s183 + $0x18] sm:$0xf]
        %v197 = vld [vmem:[%s183 + $0x1c] sm:$0xf]
        %v198 = vld [vmem:[%s183 + $0x20] sm:$0xf]
        %v199 = vld [vmem:[%s183 + $0x24] sm:$0xf]
        %v200 = vld [vmem:[%s183 + $0x28] sm:$0xf]
        %v201 = vld [vmem:[%s183 + $0x2c] sm:$0xf]
        %v202 = vld [vmem:[%s183 + $0x30] sm:$0xf]
        %v203 = vld [vmem:[%s183 + $0x34] sm:$0xf]
        %v204 = vld [vmem:[%s183 + $0x38] sm:$0xf]
        %v205 = vld [vmem:[%s183 + $0x3c] sm:$0xf]
        %v206 = vld [vmem:[%s183 + $0x40] sm:$0xf]
        %v207 = vld [vmem:[%s183 + $0x44] sm:$0xf]
        %v208 = vld [vmem:[%s183 + $0x48] sm:$0xf]
        %v209 = vld [vmem:[%s183 + $0x4c] sm:$0xf]
        %v210 = vld [vmem:[%s183 + $0x50] sm:$0xf]
        %v211 = vld [vmem:[%s183 + $0x54] sm:$0xf]
        %v212 = vld [vmem:[%s183 + $0x58] sm:$0xf]
        %v213 = vld [vmem:[%s183 + $0x5c] sm:$0xf]
        %v214 = vld [vmem:[%s183 + $0x60] sm:$0xf]
        %v215 = vld [vmem:[%s183 + $0x64] sm:$0xf]
        %v216 = vld [vmem:[%s183 + $0x68] sm:$0xf]
        %v217 = vld [vmem:[%s183 + $0x6c] sm:$0xf]
        %v218 = vld [vmem:[%s183 + $0x70] sm:$0xf]
        %v219 = vld [vmem:[%s183 + $0x74] sm:$0xf]
        %v220 = vld [vmem:[%s183 + $0x78] sm:$0xf]
        %v221 = vld [vmem:[%s183 + $0x7c] sm:$0xf]
        %v222 = vld [vmem:[%s188] sm:$0xf]
        %v223 = vld [vmem:[%s188 + $0x4] sm:$0xf]
        %v224 = vld [vmem:[%s188 + $0x8] sm:$0xf]
        %v225 = vld [vmem:[%s188 + $0xc] sm:$0xf]
        %v226 = vld [vmem:[%s188 + $0x10] sm:$0xf]
        %v227 = vld [vmem:[%s188 + $0x14] sm:$0xf]
        %v228 = vld [vmem:[%s188 + $0x18] sm:$0xf]
        %v229 = vld [vmem:[%s188 + $0x1c] sm:$0xf]
        %v230 = vld [vmem:[%s188 + $0x20] sm:$0xf]
        %v231 = vld [vmem:[%s188 + $0x24] sm:$0xf]
        %v232 = vld [vmem:[%s188 + $0x28] sm:$0xf]
        %v233 = vld [vmem:[%s188 + $0x2c] sm:$0xf]
        %v234 = vld [vmem:[%s188 + $0x30] sm:$0xf]
        %v235 = vld [vmem:[%s188 + $0x34] sm:$0xf]
        %v236 = vld [vmem:[%s188 + $0x38] sm:$0xf]
        %v237 = vld [vmem:[%s188 + $0x3c] sm:$0xf]
        %v238 = vld [vmem:[%s188 + $0x40] sm:$0xf]
        %v239 = vld [vmem:[%s188 + $0x44] sm:$0xf]
        %v240 = vld [vmem:[%s188 + $0x48] sm:$0xf]
        %v241 = vld [vmem:[%s188 + $0x4c] sm:$0xf]
        %v242 = vld [vmem:[%s188 + $0x50] sm:$0xf]
        %v243 = vld [vmem:[%s188 + $0x54] sm:$0xf]
        %v244 = vld [vmem:[%s188 + $0x58] sm:$0xf]
        %v245 = vld [vmem:[%s188 + $0x5c] sm:$0xf]
        %v246 = vld [vmem:[%s188 + $0x60] sm:$0xf]
        %v247 = vld [vmem:[%s188 + $0x64] sm:$0xf]
        %v248 = vld [vmem:[%s188 + $0x68] sm:$0xf]
        %v249 = vld [vmem:[%s188 + $0x6c] sm:$0xf]
        %v250 = vld [vmem:[%s188 + $0x70] sm:$0xf]
        %v251 = vld [vmem:[%s188 + $0x74] sm:$0xf]
        %v252 = vld [vmem:[%s188 + $0x78] sm:$0xf]
        %v253 = vld [vmem:[%s188 + $0x7c] sm:$0xf]
        %v262 = vunpack.c.l.b16 %v190
        %v263 = vunpack.c.l.b16 %v191
        %v264 = vunpack.c.l.b16 %v192
        %v265 = vunpack.c.l.b16 %v193
        %v266 = vunpack.c.l.b16 %v194
        %v267 = vunpack.c.l.b16 %v195
        %v268 = vunpack.c.l.b16 %v196
        %v269 = vunpack.c.l.b16 %v197
        %v270 = vpack.c.b16 %v263, %v262
        %v271 = vpack.c.b16 %v265, %v264
        %v272 = vpack.c.b16 %v267, %v266
        %v273 = vpack.c.b16 %v269, %v268
        %v282 = vunpack.c.l.b16 %v222
        %v283 = vunpack.c.l.b16 %v223
        %v284 = vunpack.c.l.b16 %v224
        %v285 = vunpack.c.l.b16 %v225
        %v286 = vunpack.c.l.b16 %v226
        %v287 = vunpack.c.l.b16 %v227
        %v288 = vunpack.c.l.b16 %v228
        %v289 = vunpack.c.l.b16 %v229
        %v290 = vpack.c.b16 %v283, %v282
        %v291 = vpack.c.b16 %v285, %v284
        %v292 = vpack.c.b16 %v287, %v286
        %v293 = vpack.c.b16 %v289, %v288
        %vm294 = vcmask 261120
        %v296 = vsel %vm294, %v270, 0
        %v299 = vsel %vm294, %v271, 0
        %v302 = vsel %vm294, %v272, 0
        %v305 = vsel %vm294, %v273, 0
        %v308 = vsel %vm294, %v290, 0
        %v311 = vsel %vm294, %v291, 0
        %v314 = vsel %vm294, %v292, 0
        %v317 = vsel %vm294, %v293, 0
        %319 = vmatpush.bf16.xpose.msra.mxu0 0
        %320 = vmatpush.bf16.xpose.msra.mxu0 0
        %321 = vmatpush.bf16.xpose.msra.mxu0 0
        %322 = vmatpush.bf16.xpose.msra.mxu0 0
        %323 = vmatpush.bf16.xpose.msra.mxu0 %v317
        %324 = vmatpush.bf16.xpose.msra.mxu0 %v314
        %325 = vmatpush.bf16.xpose.msra.mxu0 %v311
        %326 = vmatpush.bf16.xpose.msra.mxu0 %v308
        %327 = vmatmul.bf16.gmra.mxu0 %v296
        %v328 = vpop.f32.mrf.mxu0
        %v329 = vadd.f32 0.0, %v328
        %v330 = vpop.f32.mrf.mxu0
        %v331 = vadd.f32 0.0, %v330
        %332 = vmatmul.bf16.gmra.mxu0 %v299
        %v333 = vpop.f32.mrf.mxu0
        %v334 = vadd.f32 0.0, %v333
        %v335 = vpop.f32.mrf.mxu0
        %v336 = vadd.f32 0.0, %v335
        %337 = vmatmul.bf16.gmra.mxu0 %v302
        %v338 = vpop.f32.mrf.mxu0
        %v339 = vadd.f32 0.0, %v338
        %v340 = vpop.f32.mrf.mxu0
        %v341 = vadd.f32 0.0, %v340
        %342 = vmatmul.bf16.gmra.mxu0 %v305
        %v343 = vpop.f32.mrf.mxu0
        %v344 = vadd.f32 0.0, %v343
        %v345 = vpop.f32.mrf.mxu0
        %v346 = vadd.f32 0.0, %v345
        %347 = vdwg.mxu0
        %v356 = vunpack.c.l.b16 %v198
        %v357 = vunpack.c.l.b16 %v199
        %v358 = vunpack.c.l.b16 %v200
        %v359 = vunpack.c.l.b16 %v201
        %v360 = vunpack.c.l.b16 %v202
        %v361 = vunpack.c.l.b16 %v203
        %v362 = vunpack.c.l.b16 %v204
        %v363 = vunpack.c.l.b16 %v205
        %v364 = vpack.c.b16 %v357, %v356
        %v365 = vpack.c.b16 %v359, %v358
        %v366 = vpack.c.b16 %v361, %v360
        %v367 = vpack.c.b16 %v363, %v362
        %v376 = vunpack.c.l.b16 %v230
        %v377 = vunpack.c.l.b16 %v231
        %v378 = vunpack.c.l.b16 %v232
        %v379 = vunpack.c.l.b16 %v233
        %v380 = vunpack.c.l.b16 %v234
        %v381 = vunpack.c.l.b16 %v235
        %v382 = vunpack.c.l.b16 %v236
        %v383 = vunpack.c.l.b16 %v237
        %v384 = vpack.c.b16 %v377, %v376
        %v385 = vpack.c.b16 %v379, %v378
        %v386 = vpack.c.b16 %v381, %v380
        %v387 = vpack.c.b16 %v383, %v382
        %v389 = vsel %vm294, %v364, 0
        %v392 = vsel %vm294, %v365, 0
        %v395 = vsel %vm294, %v366, 0
        %v398 = vsel %vm294, %v367, 0
        %v401 = vsel %vm294, %v384, 0
        %v404 = vsel %vm294, %v385, 0
        %v407 = vsel %vm294, %v386, 0
        %v410 = vsel %vm294, %v387, 0
        %412 = vmatpush.bf16.xpose.msra.mxu0 0
        %413 = vmatpush.bf16.xpose.msra.mxu0 0
        %414 = vmatpush.bf16.xpose.msra.mxu0 0
        %415 = vmatpush.bf16.xpose.msra.mxu0 0
        %416 = vmatpush.bf16.xpose.msra.mxu0 %v410
        %417 = vmatpush.bf16.xpose.msra.mxu0 %v407
        %418 = vmatpush.bf16.xpose.msra.mxu0 %v404
        %419 = vmatpush.bf16.xpose.msra.mxu0 %v401
        %420 = vmatmul.bf16.gmra.mxu0 %v389
        %v421 = vpop.f32.mrf.mxu0
        %v422 = vadd.f32 0.0, %v421
        %v423 = vpop.f32.mrf.mxu0
        %v424 = vadd.f32 0.0, %v423
        %425 = vmatmul.bf16.gmra.mxu0 %v392
        %v426 = vpop.f32.mrf.mxu0
        %v427 = vadd.f32 0.0, %v426
        %v428 = vpop.f32.mrf.mxu0
        %v429 = vadd.f32 0.0, %v428
        %430 = vmatmul.bf16.gmra.mxu0 %v395
        %v431 = vpop.f32.mrf.mxu0
        %v432 = vadd.f32 0.0, %v431
        %v433 = vpop.f32.mrf.mxu0
        %v434 = vadd.f32 0.0, %v433
        %435 = vmatmul.bf16.gmra.mxu0 %v398
        %v436 = vpop.f32.mrf.mxu0
        %v437 = vadd.f32 0.0, %v436
        %v438 = vpop.f32.mrf.mxu0
        %v439 = vadd.f32 0.0, %v438
        %440 = vdwg.mxu0
        %v449 = vunpack.c.l.b16 %v206
        %v450 = vunpack.c.l.b16 %v207
        %v451 = vunpack.c.l.b16 %v208
        %v452 = vunpack.c.l.b16 %v209
        %v453 = vunpack.c.l.b16 %v210
        %v454 = vunpack.c.l.b16 %v211
        %v455 = vunpack.c.l.b16 %v212
        %v456 = vunpack.c.l.b16 %v213
        %v457 = vpack.c.b16 %v450, %v449
        %v458 = vpack.c.b16 %v452, %v451
        %v459 = vpack.c.b16 %v454, %v453
        %v460 = vpack.c.b16 %v456, %v455
        %v469 = vunpack.c.l.b16 %v238
        %v470 = vunpack.c.l.b16 %v239
        %v471 = vunpack.c.l.b16 %v240
        %v472 = vunpack.c.l.b16 %v241
        %v473 = vunpack.c.l.b16 %v242
        %v474 = vunpack.c.l.b16 %v243
        %v475 = vunpack.c.l.b16 %v244
        %v476 = vunpack.c.l.b16 %v245
        %v477 = vpack.c.b16 %v470, %v469
        %v478 = vpack.c.b16 %v472, %v471
        %v479 = vpack.c.b16 %v474, %v473
        %v480 = vpack.c.b16 %v476, %v475
        %v482 = vsel %vm294, %v457, 0
        %v485 = vsel %vm294, %v458, 0
        %v488 = vsel %vm294, %v459, 0
        %v491 = vsel %vm294, %v460, 0
        %v494 = vsel %vm294, %v477, 0
        %v497 = vsel %vm294, %v478, 0
        %v500 = vsel %vm294, %v479, 0
        %v503 = vsel %vm294, %v480, 0
        %505 = vmatpush.bf16.xpose.msra.mxu0 0
        %506 = vmatpush.bf16.xpose.msra.mxu0 0
        %507 = vmatpush.bf16.xpose.msra.mxu0 0
        %508 = vmatpush.bf16.xpose.msra.mxu0 0
        %509 = vmatpush.bf16.xpose.msra.mxu0 %v503
        %510 = vmatpush.bf16.xpose.msra.mxu0 %v500
        %511 = vmatpush.bf16.xpose.msra.mxu0 %v497
        %512 = vmatpush.bf16.xpose.msra.mxu0 %v494
        %513 = vmatmul.bf16.gmra.mxu0 %v482
        %v514 = vpop.f32.mrf.mxu0
        %v515 = vadd.f32 0.0, %v514
        %v516 = vpop.f32.mrf.mxu0
        %v517 = vadd.f32 0.0, %v516
        %518 = vmatmul.bf16.gmra.mxu0 %v485
        %v519 = vpop.f32.mrf.mxu0
        %v520 = vadd.f32 0.0, %v519
        %v521 = vpop.f32.mrf.mxu0
        %v522 = vadd.f32 0.0, %v521
        %523 = vmatmul.bf16.gmra.mxu0 %v488
        %v524 = vpop.f32.mrf.mxu0
        %v525 = vadd.f32 0.0, %v524
        %v526 = vpop.f32.mrf.mxu0
        %v527 = vadd.f32 0.0, %v526
        %528 = vmatmul.bf16.gmra.mxu0 %v491
        %v529 = vpop.f32.mrf.mxu0
        %v530 = vadd.f32 0.0, %v529
        %v531 = vpop.f32.mrf.mxu0
        %v532 = vadd.f32 0.0, %v531
        %533 = vdwg.mxu0
        %v542 = vunpack.c.l.b16 %v214
        %v543 = vunpack.c.l.b16 %v215
        %v544 = vunpack.c.l.b16 %v216
        %v545 = vunpack.c.l.b16 %v217
        %v546 = vunpack.c.l.b16 %v218
        %v547 = vunpack.c.l.b16 %v219
        %v548 = vunpack.c.l.b16 %v220
        %v549 = vunpack.c.l.b16 %v221
        %v550 = vpack.c.b16 %v543, %v542
        %v551 = vpack.c.b16 %v545, %v544
        %v552 = vpack.c.b16 %v547, %v546
        %v553 = vpack.c.b16 %v549, %v548
        %v562 = vunpack.c.l.b16 %v246
        %v563 = vunpack.c.l.b16 %v247
        %v564 = vunpack.c.l.b16 %v248
        %v565 = vunpack.c.l.b16 %v249
        %v566 = vunpack.c.l.b16 %v250
        %v567 = vunpack.c.l.b16 %v251
        %v568 = vunpack.c.l.b16 %v252
        %v569 = vunpack.c.l.b16 %v253
        %v570 = vpack.c.b16 %v563, %v562
        %v571 = vpack.c.b16 %v565, %v564
        %v572 = vpack.c.b16 %v567, %v566
        %v573 = vpack.c.b16 %v569, %v568
        %v575 = vsel %vm294, %v550, 0
        %v578 = vsel %vm294, %v551, 0
        %v581 = vsel %vm294, %v552, 0
        %v584 = vsel %vm294, %v553, 0
        %v587 = vsel %vm294, %v570, 0
        %v590 = vsel %vm294, %v571, 0
        %v593 = vsel %vm294, %v572, 0
        %v596 = vsel %vm294, %v573, 0
        %598 = vmatpush.bf16.xpose.msra.mxu0 0
        %599 = vmatpush.bf16.xpose.msra.mxu0 0
        %600 = vmatpush.bf16.xpose.msra.mxu0 0
        %601 = vmatpush.bf16.xpose.msra.mxu0 0
        %602 = vmatpush.bf16.xpose.msra.mxu0 %v596
        %603 = vmatpush.bf16.xpose.msra.mxu0 %v593
        %604 = vmatpush.bf16.xpose.msra.mxu0 %v590
        %605 = vmatpush.bf16.xpose.msra.mxu0 %v587
        %606 = vmatmul.bf16.gmra.mxu0 %v575
        %v607 = vpop.f32.mrf.mxu0
        %v608 = vadd.f32 0.0, %v607
        %v609 = vpop.f32.mrf.mxu0
        %v610 = vadd.f32 0.0, %v609
        %611 = vmatmul.bf16.gmra.mxu0 %v578
        %v612 = vpop.f32.mrf.mxu0
        %v613 = vadd.f32 0.0, %v612
        %v614 = vpop.f32.mrf.mxu0
        %v615 = vadd.f32 0.0, %v614
        %616 = vmatmul.bf16.gmra.mxu0 %v581
        %v617 = vpop.f32.mrf.mxu0
        %v618 = vadd.f32 0.0, %v617
        %v619 = vpop.f32.mrf.mxu0
        %v620 = vadd.f32 0.0, %v619
        %621 = vmatmul.bf16.gmra.mxu0 %v584
        %v622 = vpop.f32.mrf.mxu0
        %v623 = vadd.f32 0.0, %v622
        %v624 = vpop.f32.mrf.mxu0
        %v625 = vadd.f32 0.0, %v624
        %626 = vdwg.mxu0
        %v627 = vld [vmem:[%s2] sm:$0xff]
        %v628 = vld [vmem:[%s2 + $0x8] sm:$0xff]
        %v629 = vld [vmem:[%s2 + $0x10] sm:$0xff]
        %v630 = vld [vmem:[%s2 + $0x18] sm:$0xff]
        %v631 = vld [vmem:[%s2 + $0x20] sm:$0xff]
        %v632 = vld [vmem:[%s2 + $0x28] sm:$0xff]
        %v633 = vld [vmem:[%s2 + $0x30] sm:$0xff]
        %v634 = vld [vmem:[%s2 + $0x38] sm:$0xff]
        %vm635 = vcmp.gt.f32.partialorder %v627, 0.0
        %vm636 = vcmp.gt.f32.partialorder %v628, 0.0
        %vm637 = vcmp.gt.f32.partialorder %v629, 0.0
        %vm638 = vcmp.gt.f32.partialorder %v630, 0.0
        %vm639 = vcmp.gt.f32.partialorder %v631, 0.0
        %vm640 = vcmp.gt.f32.partialorder %v632, 0.0
        %vm641 = vcmp.gt.f32.partialorder %v633, 0.0
        %vm642 = vcmp.gt.f32.partialorder %v634, 0.0
        %v643 = vsel %vm635, 1, 0
        %v644 = vsel %vm636, 1, 0
        %v645 = vsel %vm637, 1, 0
        %v646 = vsel %vm638, 1, 0
        %v647 = vsel %vm639, 1, 0
        %v648 = vsel %vm640, 1, 0
        %v649 = vsel %vm641, 1, 0
        %v650 = vsel %vm642, 1, 0
        %vm651 = vcmp.eq.s32.totalorder %v643, 1
        %vm652 = vcmp.eq.s32.totalorder %v644, 1
        %vm653 = vcmp.eq.s32.totalorder %v645, 1
        %vm654 = vcmp.eq.s32.totalorder %v646, 1
        %vm655 = vcmp.eq.s32.totalorder %v647, 1
        %vm656 = vcmp.eq.s32.totalorder %v648, 1
        %vm657 = vcmp.eq.s32.totalorder %v649, 1
        %vm658 = vcmp.eq.s32.totalorder %v650, 1
        %v659 = vsel %vm651, %v329, -inf
        %v660 = vsel %vm652, %v331, -inf
        %v661 = vsel %vm653, %v334, -inf
        %v662 = vsel %vm654, %v336, -inf
        %v663 = vsel %vm655, %v339, -inf
        %v664 = vsel %vm656, %v341, -inf
        %v665 = vsel %vm657, %v344, -inf
        %v666 = vsel %vm658, %v346, -inf
        %v667 = vsel %vm651, %v422, -inf
        %v668 = vsel %vm652, %v424, -inf
        %v669 = vsel %vm653, %v427, -inf
        %v670 = vsel %vm654, %v429, -inf
        %v671 = vsel %vm655, %v432, -inf
        %v672 = vsel %vm656, %v434, -inf
        %v673 = vsel %vm657, %v437, -inf
        %v674 = vsel %vm658, %v439, -inf
        %v675 = vsel %vm651, %v515, -inf
        %v676 = vsel %vm652, %v517, -inf
        %v677 = vsel %vm653, %v520, -inf
        %v678 = vsel %vm654, %v522, -inf
        %v679 = vsel %vm655, %v525, -inf
        %v680 = vsel %vm656, %v527, -inf
        %v681 = vsel %vm657, %v530, -inf
        %v682 = vsel %vm658, %v532, -inf
        %v683 = vsel %vm651, %v608, -inf
        %v684 = vsel %vm652, %v610, -inf
        %v685 = vsel %vm653, %v613, -inf
        %v686 = vsel %vm654, %v615, -inf
        %v687 = vsel %vm655, %v618, -inf
        %v688 = vsel %vm656, %v620, -inf
        %v689 = vsel %vm657, %v623, -inf
        %v690 = vsel %vm658, %v625, -inf
        %vm691 = vcmask 523264
        %v692 = vsel %vm691, %v659, -inf
        %693 = vmax.xlane.f32.xlu0 %v692
        %v694 = vpop.xlane.xlu0 %693
        %v695 = vsel %vm691, %v660, -inf
        %696 = vmax.xlane.f32.xlu0 %v695
        %v697 = vpop.xlane.xlu0 %696
        %v698 = vsel %vm691, %v661, -inf
        %699 = vmax.xlane.f32.xlu0 %v698
        %v700 = vpop.xlane.xlu0 %699
        %v701 = vsel %vm691, %v662, -inf
        %702 = vmax.xlane.f32.xlu0 %v701
        %v703 = vpop.xlane.xlu0 %702
        %v704 = vsel %vm691, %v663, -inf
        %705 = vmax.xlane.f32.xlu0 %v704
        %v706 = vpop.xlane.xlu0 %705
        %v707 = vsel %vm691, %v664, -inf
        %708 = vmax.xlane.f32.xlu0 %v707
        %v709 = vpop.xlane.xlu0 %708
        %v710 = vsel %vm691, %v665, -inf
        %711 = vmax.xlane.f32.xlu0 %v710
        %v712 = vpop.xlane.xlu0 %711
        %v713 = vsel %vm691, %v666, -inf
        %714 = vmax.xlane.f32.xlu0 %v713
        %v715 = vpop.xlane.xlu0 %714
        %v716 = vsel %vm691, %v667, -inf
        %717 = vmax.xlane.f32.xlu0 %v716
        %v718 = vpop.xlane.xlu0 %717
        %v719 = vsel %vm691, %v668, -inf
        %720 = vmax.xlane.f32.xlu0 %v719
        %v721 = vpop.xlane.xlu0 %720
        %v722 = vsel %vm691, %v669, -inf
        %723 = vmax.xlane.f32.xlu0 %v722
        %v724 = vpop.xlane.xlu0 %723
        %v725 = vsel %vm691, %v670, -inf
        %726 = vmax.xlane.f32.xlu0 %v725
        %v727 = vpop.xlane.xlu0 %726
        %v728 = vsel %vm691, %v671, -inf
        %729 = vmax.xlane.f32.xlu0 %v728
        %v730 = vpop.xlane.xlu0 %729
        %v731 = vsel %vm691, %v672, -inf
        %732 = vmax.xlane.f32.xlu0 %v731
        %v733 = vpop.xlane.xlu0 %732
        %v734 = vsel %vm691, %v673, -inf
        %735 = vmax.xlane.f32.xlu0 %v734
        %v736 = vpop.xlane.xlu0 %735
        %v737 = vsel %vm691, %v674, -inf
        %738 = vmax.xlane.f32.xlu0 %v737
        %v739 = vpop.xlane.xlu0 %738
        %v740 = vsel %vm691, %v675, -inf
        %741 = vmax.xlane.f32.xlu0 %v740
        %v742 = vpop.xlane.xlu0 %741
        %v743 = vsel %vm691, %v676, -inf
        %744 = vmax.xlane.f32.xlu0 %v743
        %v745 = vpop.xlane.xlu0 %744
        %v746 = vsel %vm691, %v677, -inf
        %747 = vmax.xlane.f32.xlu0 %v746
        %v748 = vpop.xlane.xlu0 %747
        %v749 = vsel %vm691, %v678, -inf
        %750 = vmax.xlane.f32.xlu0 %v749
        %v751 = vpop.xlane.xlu0 %750
        %v752 = vsel %vm691, %v679, -inf
        %753 = vmax.xlane.f32.xlu0 %v752
        %v754 = vpop.xlane.xlu0 %753
        %v755 = vsel %vm691, %v680, -inf
        %756 = vmax.xlane.f32.xlu0 %v755
        %v757 = vpop.xlane.xlu0 %756
        %v758 = vsel %vm691, %v681, -inf
        %759 = vmax.xlane.f32.xlu0 %v758
        %v760 = vpop.xlane.xlu0 %759
        %v761 = vsel %vm691, %v682, -inf
        %762 = vmax.xlane.f32.xlu0 %v761
        %v763 = vpop.xlane.xlu0 %762
        %v764 = vsel %vm691, %v683, -inf
        %765 = vmax.xlane.f32.xlu0 %v764
        %v766 = vpop.xlane.xlu0 %765
        %v767 = vsel %vm691, %v684, -inf
        %768 = vmax.xlane.f32.xlu0 %v767
        %v769 = vpop.xlane.xlu0 %768
        %v770 = vsel %vm691, %v685, -inf
        %771 = vmax.xlane.f32.xlu0 %v770
        %v772 = vpop.xlane.xlu0 %771
        %v773 = vsel %vm691, %v686, -inf
        %774 = vmax.xlane.f32.xlu0 %v773
        %v775 = vpop.xlane.xlu0 %774
        %v776 = vsel %vm691, %v687, -inf
        %777 = vmax.xlane.f32.xlu0 %v776
        %v778 = vpop.xlane.xlu0 %777
        %v779 = vsel %vm691, %v688, -inf
        %780 = vmax.xlane.f32.xlu0 %v779
        %v781 = vpop.xlane.xlu0 %780
        %v782 = vsel %vm691, %v689, -inf
        %783 = vmax.xlane.f32.xlu0 %v782
        %v784 = vpop.xlane.xlu0 %783
        %v785 = vsel %vm691, %v690, -inf
        %786 = vmax.xlane.f32.xlu0 %v785
        %v787 = vpop.xlane.xlu0 %786
        %v788 = vmul.f32 %v329, %v627
        %v789 = vmul.f32 %v331, %v628
        %v790 = vmul.f32 %v334, %v629
        %v791 = vmul.f32 %v336, %v630
        %v792 = vmul.f32 %v339, %v631
        %v793 = vmul.f32 %v341, %v632
        %v794 = vmul.f32 %v344, %v633
        %v795 = vmul.f32 %v346, %v634
        %v796 = vmul.f32 %v422, %v627
        %v797 = vmul.f32 %v424, %v628
        %v798 = vmul.f32 %v427, %v629
        %v799 = vmul.f32 %v429, %v630
        %v800 = vmul.f32 %v432, %v631
        %v801 = vmul.f32 %v434, %v632
        %v802 = vmul.f32 %v437, %v633
        %v803 = vmul.f32 %v439, %v634
        %v804 = vmul.f32 %v515, %v627
        %v805 = vmul.f32 %v517, %v628
        %v806 = vmul.f32 %v520, %v629
        %v807 = vmul.f32 %v522, %v630
        %v808 = vmul.f32 %v525, %v631
        %v809 = vmul.f32 %v527, %v632
        %v810 = vmul.f32 %v530, %v633
        %v811 = vmul.f32 %v532, %v634
        %v812 = vmul.f32 %v608, %v627
        %v813 = vmul.f32 %v610, %v628
        %v814 = vmul.f32 %v613, %v629
        %v815 = vmul.f32 %v615, %v630
        %v816 = vmul.f32 %v618, %v631
        %v817 = vmul.f32 %v620, %v632
        %v818 = vmul.f32 %v623, %v633
        %v819 = vmul.f32 %v625, %v634
        %v820 = vsel %vm691, %v788, 0.0
        %821 = vadd.xlane.f32.xlu0 %v820
        %v822 = vpop.xlane.xlu0 %821
        %v823 = vsel %vm691, %v789, 0.0
        %824 = vadd.xlane.f32.xlu0 %v823
        %v825 = vpop.xlane.xlu0 %824
        %v826 = vsel %vm691, %v790, 0.0
        %827 = vadd.xlane.f32.xlu0 %v826
        %v828 = vpop.xlane.xlu0 %827
        %v829 = vsel %vm691, %v791, 0.0
        %830 = vadd.xlane.f32.xlu0 %v829
        %v831 = vpop.xlane.xlu0 %830
        %v832 = vsel %vm691, %v792, 0.0
        %833 = vadd.xlane.f32.xlu0 %v832
        %v834 = vpop.xlane.xlu0 %833
        %v835 = vsel %vm691, %v793, 0.0
        %836 = vadd.xlane.f32.xlu0 %v835
        %v837 = vpop.xlane.xlu0 %836
        %v838 = vsel %vm691, %v794, 0.0
        %839 = vadd.xlane.f32.xlu0 %v838
        %v840 = vpop.xlane.xlu0 %839
        %v841 = vsel %vm691, %v795, 0.0
        %842 = vadd.xlane.f32.xlu0 %v841
        %v843 = vpop.xlane.xlu0 %842
        %v844 = vsel %vm691, %v796, 0.0
        %845 = vadd.xlane.f32.xlu0 %v844
        %v846 = vpop.xlane.xlu0 %845
        %v847 = vsel %vm691, %v797, 0.0
        %848 = vadd.xlane.f32.xlu0 %v847
        %v849 = vpop.xlane.xlu0 %848
        %v850 = vsel %vm691, %v798, 0.0
        %851 = vadd.xlane.f32.xlu0 %v850
        %v852 = vpop.xlane.xlu0 %851
        %v853 = vsel %vm691, %v799, 0.0
        %854 = vadd.xlane.f32.xlu0 %v853
        %v855 = vpop.xlane.xlu0 %854
        %v856 = vsel %vm691, %v800, 0.0
        %857 = vadd.xlane.f32.xlu0 %v856
        %v858 = vpop.xlane.xlu0 %857
        %v859 = vsel %vm691, %v801, 0.0
        %860 = vadd.xlane.f32.xlu0 %v859
        %v861 = vpop.xlane.xlu0 %860
        %v862 = vsel %vm691, %v802, 0.0
        %863 = vadd.xlane.f32.xlu0 %v862
        %v864 = vpop.xlane.xlu0 %863
        %v865 = vsel %vm691, %v803, 0.0
        %866 = vadd.xlane.f32.xlu0 %v865
        %v867 = vpop.xlane.xlu0 %866
        %v868 = vsel %vm691, %v804, 0.0
        %869 = vadd.xlane.f32.xlu0 %v868
        %v870 = vpop.xlane.xlu0 %869
        %v871 = vsel %vm691, %v805, 0.0
        %872 = vadd.xlane.f32.xlu0 %v871
        %v873 = vpop.xlane.xlu0 %872
        %v874 = vsel %vm691, %v806, 0.0
        %875 = vadd.xlane.f32.xlu0 %v874
        %v876 = vpop.xlane.xlu0 %875
        %v877 = vsel %vm691, %v807, 0.0
        %878 = vadd.xlane.f32.xlu0 %v877
        %v879 = vpop.xlane.xlu0 %878
        %v880 = vsel %vm691, %v808, 0.0
        %881 = vadd.xlane.f32.xlu0 %v880
        %v882 = vpop.xlane.xlu0 %881
        %v883 = vsel %vm691, %v809, 0.0
        %884 = vadd.xlane.f32.xlu0 %v883
        %v885 = vpop.xlane.xlu0 %884
        %v886 = vsel %vm691, %v810, 0.0
        %887 = vadd.xlane.f32.xlu0 %v886
        %v888 = vpop.xlane.xlu0 %887
        %v889 = vsel %vm691, %v811, 0.0
        %890 = vadd.xlane.f32.xlu0 %v889
        %v891 = vpop.xlane.xlu0 %890
        %v892 = vsel %vm691, %v812, 0.0
        %893 = vadd.xlane.f32.xlu0 %v892
        %v894 = vpop.xlane.xlu0 %893
        %v895 = vsel %vm691, %v813, 0.0
        %896 = vadd.xlane.f32.xlu0 %v895
        %v897 = vpop.xlane.xlu0 %896
        %v898 = vsel %vm691, %v814, 0.0
        %899 = vadd.xlane.f32.xlu0 %v898
        %v900 = vpop.xlane.xlu0 %899
        %v901 = vsel %vm691, %v815, 0.0
        %902 = vadd.xlane.f32.xlu0 %v901
        %v903 = vpop.xlane.xlu0 %902
        %v904 = vsel %vm691, %v816, 0.0
        %905 = vadd.xlane.f32.xlu0 %v904
        %v906 = vpop.xlane.xlu0 %905
        %v907 = vsel %vm691, %v817, 0.0
        %908 = vadd.xlane.f32.xlu0 %v907
        %v909 = vpop.xlane.xlu0 %908
        %v910 = vsel %vm691, %v818, 0.0
        %911 = vadd.xlane.f32.xlu0 %v910
        %v912 = vpop.xlane.xlu0 %911
        %v913 = vsel %vm691, %v819, 0.0
        %914 = vadd.xlane.f32.xlu0 %v913
        %v915 = vpop.xlane.xlu0 %914
        %v916 = vmul.f32 %v822, 0.015625
        %v917 = vmul.f32 %v825, 0.015625
        %v918 = vmul.f32 %v828, 0.015625
        %v919 = vmul.f32 %v831, 0.015625
        %v920 = vmul.f32 %v834, 0.015625
        %v921 = vmul.f32 %v837, 0.015625
        %v922 = vmul.f32 %v840, 0.015625
        %v923 = vmul.f32 %v843, 0.015625
        %v924 = vmul.f32 %v846, 0.015625
        %v925 = vmul.f32 %v849, 0.015625
        %v926 = vmul.f32 %v852, 0.015625
        %v927 = vmul.f32 %v855, 0.015625
        %v928 = vmul.f32 %v858, 0.015625
        %v929 = vmul.f32 %v861, 0.015625
        %v930 = vmul.f32 %v864, 0.015625
        %v931 = vmul.f32 %v867, 0.015625
        %v932 = vmul.f32 %v870, 0.015625
        %v933 = vmul.f32 %v873, 0.015625
        %v934 = vmul.f32 %v876, 0.015625
        %v935 = vmul.f32 %v879, 0.015625
        %v936 = vmul.f32 %v882, 0.015625
        %v937 = vmul.f32 %v885, 0.015625
        %v938 = vmul.f32 %v888, 0.015625
        %v939 = vmul.f32 %v891, 0.015625
        %v940 = vmul.f32 %v894, 0.015625
        %v941 = vmul.f32 %v897, 0.015625
        %v942 = vmul.f32 %v900, 0.015625
        %v943 = vmul.f32 %v903, 0.015625
        %v944 = vmul.f32 %v906, 0.015625
        %v945 = vmul.f32 %v909, 0.015625
        %v946 = vmul.f32 %v912, 0.015625
        %v947 = vmul.f32 %v915, 0.015625
        %v948 = vsub.f32 %v694, %v916
        %v949 = vsub.f32 %v697, %v917
        %v950 = vsub.f32 %v700, %v918
        %v951 = vsub.f32 %v703, %v919
        %v952 = vsub.f32 %v706, %v920
        %v953 = vsub.f32 %v709, %v921
        %v954 = vsub.f32 %v712, %v922
        %v955 = vsub.f32 %v715, %v923
        %v956 = vsub.f32 %v718, %v924
        %v957 = vsub.f32 %v721, %v925
        %v958 = vsub.f32 %v724, %v926
        %v959 = vsub.f32 %v727, %v927
        %v960 = vsub.f32 %v730, %v928
        %v961 = vsub.f32 %v733, %v929
        %v962 = vsub.f32 %v736, %v930
        %v963 = vsub.f32 %v739, %v931
        %v964 = vsub.f32 %v742, %v932
        %v965 = vsub.f32 %v745, %v933
        %v966 = vsub.f32 %v748, %v934
        %v967 = vsub.f32 %v751, %v935
        %v968 = vsub.f32 %v754, %v936
        %v969 = vsub.f32 %v757, %v937
        %v970 = vsub.f32 %v760, %v938
        %v971 = vsub.f32 %v763, %v939
        %v972 = vsub.f32 %v766, %v940
        %v973 = vsub.f32 %v769, %v941
        %v974 = vsub.f32 %v772, %v942
        %v975 = vsub.f32 %v775, %v943
        %v976 = vsub.f32 %v778, %v944
        %v977 = vsub.f32 %v781, %v945
        %v978 = vsub.f32 %v784, %v946
        %v979 = vsub.f32 %v787, %v947
        %v1012 = vlaneseq
        %v1013 = vand.u32 %v1012, 127
        %v1014 = vperm.slane %v948, %v1013
        %v1015 = vadd.s32 %v1013, 4294967288
        %v1016 = vperm.slane %v949, %v1015
        %vm1017 = vcmask 130112
        %v1018 = vsel %vm1017, %v1016, %v1014
        %v1019 = vadd.s32 %v1013, 4294967280
        %v1020 = vperm.slane %v950, %v1019
        %vm1021 = vcmask 195712
        %v1022 = vsel %vm1021, %v1020, %v1018
        %v1023 = vadd.s32 %v1013, 4294967272
        %v1024 = vperm.slane %v951, %v1023
        %vm1025 = vcmask 261312
        %v1026 = vsel %vm1025, %v1024, %v1022
        %v1027 = vadd.s32 %v1013, 4294967264
        %v1028 = vperm.slane %v952, %v1027
        %vm1029 = vcmask 326912
        %v1030 = vsel %vm1029, %v1028, %v1026
        %v1031 = vadd.s32 %v1013, 4294967256
        %v1032 = vperm.slane %v953, %v1031
        %vm1033 = vcmask 392512
        %v1034 = vsel %vm1033, %v1032, %v1030
        %v1035 = vadd.s32 %v1013, 4294967248
        %v1036 = vperm.slane %v954, %v1035
        %vm1037 = vcmask 458112
        %v1038 = vsel %vm1037, %v1036, %v1034
        %v1039 = vadd.s32 %v1013, 4294967240
        %v1040 = vperm.slane %v955, %v1039
        %vm1041 = vcmask 523712
        %v1042 = vsel %vm1041, %v1040, %v1038
        %v1043 = vperm.slane %v956, %v1013
        %v1044 = vperm.slane %v957, %v1015
        %v1045 = vsel %vm1017, %v1044, %v1043
        %v1046 = vperm.slane %v958, %v1019
        %v1047 = vsel %vm1021, %v1046, %v1045
        %v1048 = vperm.slane %v959, %v1023
        %v1049 = vsel %vm1025, %v1048, %v1047
        %v1050 = vperm.slane %v960, %v1027
        %v1051 = vsel %vm1029, %v1050, %v1049
        %v1052 = vperm.slane %v961, %v1031
        %v1053 = vsel %vm1033, %v1052, %v1051
        %v1054 = vperm.slane %v962, %v1035
        %v1055 = vsel %vm1037, %v1054, %v1053
        %v1056 = vperm.slane %v963, %v1039
        %v1057 = vsel %vm1041, %v1056, %v1055
        %v1058 = vperm.slane %v964, %v1013
        %v1059 = vperm.slane %v965, %v1015
        %v1060 = vsel %vm1017, %v1059, %v1058
        %v1061 = vperm.slane %v966, %v1019
        %v1062 = vsel %vm1021, %v1061, %v1060
        %v1063 = vperm.slane %v967, %v1023
        %v1064 = vsel %vm1025, %v1063, %v1062
        %v1065 = vperm.slane %v968, %v1027
        %v1066 = vsel %vm1029, %v1065, %v1064
        %v1067 = vperm.slane %v969, %v1031
        %v1068 = vsel %vm1033, %v1067, %v1066
        %v1069 = vperm.slane %v970, %v1035
        %v1070 = vsel %vm1037, %v1069, %v1068
        %v1071 = vperm.slane %v971, %v1039
        %v1072 = vsel %vm1041, %v1071, %v1070
        %v1073 = vperm.slane %v972, %v1013
        %v1074 = vperm.slane %v973, %v1015
        %v1075 = vsel %vm1017, %v1074, %v1073
        %v1076 = vperm.slane %v974, %v1019
        %v1077 = vsel %vm1021, %v1076, %v1075
        %v1078 = vperm.slane %v975, %v1023
        %v1079 = vsel %vm1025, %v1078, %v1077
        %v1080 = vperm.slane %v976, %v1027
        %v1081 = vsel %vm1029, %v1080, %v1079
        %v1082 = vperm.slane %v977, %v1031
        %v1083 = vsel %vm1033, %v1082, %v1081
        %v1084 = vperm.slane %v978, %v1035
        %v1085 = vsel %vm1037, %v1084, %v1083
        %v1086 = vperm.slane %v979, %v1039
        %v1087 = vsel %vm1041, %v1086, %v1085
        %vm1088 = vcmask 1041409
        %v1089 = vsel %vm1088, %v1057, %v1042
        %vm1090 = vcmask 1042434
        %v1091 = vsel %vm1090, %v1072, %v1089
        %vm1092 = vcmask 1043459
        %v1093 = vsel %vm1092, %v1087, %v1091
        %vm1095 = vcmask 519168
        %1096 = vst.msk [vmem:[%s178] sm:$0xf] %vm1095, %v1093
        %s1097 = sand.u32 %s98, 1
        %s1098 = scalar_lea.sflag [#allocation3], %s1097
        %s1099 = sand.u32 %s98, 1
        %s1100 = smul.addr %s1099, 4
        %s1101 = scalar_lea.vmem [#allocation2], %s1100
        // Predicated region
        $region33: #{tpu_custom_call.1} parent=31 // pred_check
          %p1102 = pneg %p108
        $region34: #{tpu_custom_call.1} parent=31 // pred_check_branch
          %1104 = sbr.rel (%p1102) target = $region36
        $region35: #{tpu_custom_call.1} parent=31 // pred_region
          %1106 = vsyncadd %s1098, 0
          %s1107 = smul.addr %s17, 4
          %s1108 = scalar_lea.hbm %s3, %s1107
          %s1110 = sshll.u32 %s1101, 4
          %s1111 = int_to_ptr.vmem [resolvable:$true] %s1110
          %s1112 = sshll.u32 %s1108, 4
          %s1113 = int_to_ptr.hbm [resolvable:$true] %s1112
          %1115 = dma.vmem_to_hbm [thread:$0]  %s1111, 64, %s1113, %s1098
        $region36: #{tpu_custom_call.1} parent=31 // pred_fallthru
          _
      $region32: #{tpu_custom_call.1} parent=5 // pred_fallthru
        _
      %p1116 = scmp.le.s32.totalorder 2, %s12
      // Predicated region
      $region37: #{tpu_custom_call.1} parent=5 // pred_check
        %p1117 = pneg %p1116
      $region38: #{tpu_custom_call.1} parent=5 // pred_check_branch
        %1119 = sbr.rel (%p1117) target = $region40
      $region39: #{tpu_custom_call.1} parent=5 // pred_region
        %s1120 = ssub.s32 %s12, 2
        // Predicated region
        $region41: #{tpu_custom_call.1} parent=39 // pred_check
          %p1121 = pneg %p114
        $region42: #{tpu_custom_call.1} parent=39 // pred_check_branch
          %1123 = sbr.rel (%p1121) target = $region44
        $region43: #{tpu_custom_call.1} parent=39 // pred_region
          %s1124 = sand.u32 %s99, 1
          %s1125 = scalar_lea.sflag [#allocation3], %s1124
          %s1126 = sand.u32 %s99, 1
          %s1127 = smul.addr %s1126, 4
          %s1128 = scalar_lea.vmem [#allocation2], %s1127
          %1130 = dma.done %s1125, 64
        $region44: #{tpu_custom_call.1} parent=39 // pred_fallthru
          _
      $region40: #{tpu_custom_call.1} parent=5 // pred_fallthru
        _
    $region6: #{tpu_custom_call.1} parent=1 // loop_footer
      %s16 = sadd.s32 1, %s12
    $region7: #{tpu_custom_call.1} parent=1 // loop_footer_branch
      %11 = sbr.rel target = $region3
    $region8: #{tpu_custom_call.1} parent=1 // loop_exit
      _
    %1131 = vsyncpa [#allocation3], 1
    %s1132 = scalar_lea.sflag [#allocation3], 1
    %1133 = vsyncpa %s1132, 1

</llo_original>
